<compile_context>
chip_gen: v7x
topology: tpu7x:2x2x1
jax: 0.10.0
libtpu: 0.0.40
codegen_flags: <defaults>
</compile_context>

<pallas_src>
import jax
import jax.numpy as jnp
from jax.experimental import pallas as pl
from jax.experimental.pallas import tpu as pltpu


def discrete_action_kernel(stim_ref, args_ref, mask_ref,
                           w1k_ref, b1k_ref, w2k_ref, b2k_ref,
                           w1v_ref, b1v_ref, w2vT_ref, b2vT_ref,
                           out_ref):
    bt, n, h = args_ref.shape

    # ---- key branch: Linear -> ReLU -> Linear (once per batch tile) ----
    k = jnp.maximum(
        jnp.dot(stim_ref[...], w1k_ref[...],
                preferred_element_type=jnp.float32) + b1k_ref[...], 0.0)
    k = jnp.dot(k, w2k_ref[...],
                preferred_element_type=jnp.float32) + b2k_ref[...]         # (bt, H)

    # ---- fold the key through the second val layer ----
    # u[b] = W2v @ k[b]   ;   c[b] = b2v . k[b]
    u = jnp.dot(k, w2vT_ref[...], preferred_element_type=jnp.float32)      # (bt, H)
    c = jnp.dot(k, b2vT_ref[...], preferred_element_type=jnp.float32)      # (bt, 1)

    # ---- val branch first layer: one large 2-D (bt*N, H) x (H, H) matmul ----
    rv = jnp.maximum(
        jnp.dot(args_ref[...].reshape(bt * n, h), w1v_ref[...],
                preferred_element_type=jnp.float32) + b1v_ref[...], 0.0)   # (bt*N, H)

    # ---- contraction against the folded key + folded bias term ----
    logits = jnp.sum(rv.reshape(bt, n, h) * u[:, None, :], axis=-1) + c    # (bt, N)

    # ---- mask ----
    out_ref[...] = jnp.where(mask_ref[...] != 0, logits,
                             jnp.finfo(out_ref.dtype).min)


def discrete_action(stim, args, mask, params, *, block_b=256):
    """block_b: batch tile (multiple of 8); weights stay VMEM-resident."""
    w1k, b1k, w2k, b2k, w1v, b1v, w2v, b2v = params
    # Tiny one-time transposes outside the kernel so the fold uses std matmuls.
    w2v_t = w2v.T                      # (H, H)
    b2v_t = b2v.T                      # (H, 1)

    B, H = stim.shape
    _, N, _ = args.shape

    bt = B if B <= block_b else block_b
    n_blk = pl.cdiv(B, bt)
    Bp = n_blk * bt
    if Bp != B:
        pad = Bp - B
        stim = jnp.pad(stim, ((0, pad), (0, 0)))
        args = jnp.pad(args, ((0, pad), (0, 0), (0, 0)))
        mask = jnp.pad(mask, ((0, pad), (0, 0)))

    def weight_spec(shape):
        # Constant block index -> tensor stays resident in VMEM across the grid.
        return pl.BlockSpec(shape, lambda i: (0, 0))

    out = pl.pallas_call(
        discrete_action_kernel,
        out_shape=jax.ShapeDtypeStruct((Bp, N), jnp.float32),
        grid=(n_blk,),
        in_specs=[
            pl.BlockSpec((bt, H), lambda i: (i, 0)),          # stim
            pl.BlockSpec((bt, N, H), lambda i: (i, 0, 0)),    # args
            pl.BlockSpec((bt, N), lambda i: (i, 0)),          # mask
            weight_spec((H, H)),                              # w1k
            weight_spec((1, H)),                              # b1k
            weight_spec((H, H)),                              # w2k
            weight_spec((1, H)),                              # b2k
            weight_spec((H, H)),                              # w1v
            weight_spec((1, H)),                              # b1v
            weight_spec((H, H)),                              # w2v^T
            weight_spec((H, 1)),                              # b2v^T
        ],
        out_specs=pl.BlockSpec((bt, N), lambda i: (i, 0)),
        compiler_params=pltpu.CompilerParams(
            dimension_semantics=("parallel",)),
    )(stim, args, mask, w1k, b1k, w2k, b2k, w1v, b1v, w2v_t, b2v_t)
    return out[:B]


def init_params(key, h):
    """Deterministic parameter init. Weights stored (in, out)."""
    ks = jax.random.split(key, 8)
    scale = 1.0 / jnp.sqrt(h)
    w1k = jax.random.uniform(ks[0], (h, h), jnp.float32, -scale, scale)
    b1k = jax.random.uniform(ks[1], (1, h), jnp.float32, -scale, scale)
    w2k = jax.random.uniform(ks[2], (h, h), jnp.float32, -scale, scale)
    b2k = jax.random.uniform(ks[3], (1, h), jnp.float32, -scale, scale)
    w1v = jax.random.uniform(ks[4], (h, h), jnp.float32, -scale, scale)
    b1v = jax.random.uniform(ks[5], (1, h), jnp.float32, -scale, scale)
    w2v = jax.random.uniform(ks[6], (h, h), jnp.float32, -scale, scale)
    b2v = jax.random.uniform(ks[7], (1, h), jnp.float32, -scale, scale)
    return (w1k, b1k, w2k, b2k, w1v, b1v, w2v, b2v)


def reference(stim, args, mask, params):
    """Pure-JAX reference of the PyTorch forward (for correctness check)."""
    w1k, b1k, w2k, b2k, w1v, b1v, w2v, b2v = params
    k = jnp.maximum(stim @ w1k + b1k, 0.0) @ w2k + b2k
    v = jnp.maximum(args @ w1v + b1v, 0.0) @ w2v + b2v
    logits = jnp.sum(k[:, None, :] * v, axis=-1)
    return jnp.where(mask != 0, logits, jnp.finfo(logits.dtype).min)


if __name__ == "__main__":
    root = jax.random.PRNGKey(0)

    def run_case(B, N, H, block_b):
        keys = jax.random.split(jax.random.fold_in(root, B), 4)
        k_stim, k_args, k_mask, k_par = keys
        stim = jax.random.normal(k_stim, (B, H), jnp.float32)
        args = jax.random.normal(k_args, (B, N, H), jnp.float32)
        mask = (jax.random.uniform(k_mask, (B, N)) > 0.3).astype(jnp.int32)
        params = init_params(k_par, H)

        out = jax.block_until_ready(
            discrete_action(stim, args, mask, params, block_b=block_b))
        ref = reference(stim, args, mask, params)
        assert out.shape == (B, N)
        assert jnp.allclose(out, ref, atol=1e-3, rtol=1e-3), \
            f"mismatch vs reference (B={B})"

    # Small shapes consistent with the module: batch=2, 8 candidate actions,
    # hidden=32 (whole-batch single block), plus a case that exercises the
    # gridded + batch-padded path.
    run_case(B=2, N=8, H=32, block_b=256)
    run_case(B=12, N=8, H=32, block_b=8)
    print("KERNEL_OK")
</pallas_src>

<mosaic_0001>
module attributes {stable_mosaic.version = 11 : i64} {
  func.func @discrete_action_kernel(%arg0: i32, %arg1: memref<2x32xf32, #tpu.memory_space<vmem>>, %arg2: memref<2x8x32xf32, #tpu.memory_space<vmem>>, %arg3: memref<2x8xi32, #tpu.memory_space<vmem>>, %arg4: memref<32x32xf32, #tpu.memory_space<vmem>>, %arg5: memref<1x32xf32, #tpu.memory_space<vmem>>, %arg6: memref<32x32xf32, #tpu.memory_space<vmem>>, %arg7: memref<1x32xf32, #tpu.memory_space<vmem>>, %arg8: memref<32x32xf32, #tpu.memory_space<vmem>>, %arg9: memref<1x32xf32, #tpu.memory_space<vmem>>, %arg10: memref<32x32xf32, #tpu.memory_space<vmem>>, %arg11: memref<32x1xf32, #tpu.memory_space<vmem>>, %arg12: memref<2x8xf32, #tpu.memory_space<vmem>>) attributes {dimension_semantics = [#tpu.dimension_semantics<parallel>], iteration_bounds = array<i64: 1>, scalar_prefetch = 0 : i64, scratch_operands = 0 : i64, tpu.core_type = #tpu.core_type<tc>, window_params = [{transform_indices = @transform_0, window_bounds = array<i64: 2, 32>}, {transform_indices = @transform_1, window_bounds = array<i64: 2, 8, 32>}, {transform_indices = @transform_2, window_bounds = array<i64: 2, 8>}, {pipeline_mode = #tpu.pipeline_mode<synchronous>, transform_indices = @transform_3, window_bounds = array<i64: 32, 32>}, {pipeline_mode = #tpu.pipeline_mode<synchronous>, transform_indices = @transform_4, window_bounds = array<i64: 1, 32>}, {pipeline_mode = #tpu.pipeline_mode<synchronous>, transform_indices = @transform_5, window_bounds = array<i64: 32, 32>}, {pipeline_mode = #tpu.pipeline_mode<synchronous>, transform_indices = @transform_6, window_bounds = array<i64: 1, 32>}, {pipeline_mode = #tpu.pipeline_mode<synchronous>, transform_indices = @transform_7, window_bounds = array<i64: 32, 32>}, {pipeline_mode = #tpu.pipeline_mode<synchronous>, transform_indices = @transform_8, window_bounds = array<i64: 1, 32>}, {pipeline_mode = #tpu.pipeline_mode<synchronous>, transform_indices = @transform_9, window_bounds = array<i64: 32, 32>}, {pipeline_mode = #tpu.pipeline_mode<synchronous>, transform_indices = @transform_10, window_bounds = array<i64: 32, 1>}, {transform_indices = @transform_11, window_bounds = array<i64: 2, 8>}]} {
    %c0 = arith.constant 0 : index
    %c0_0 = arith.constant 0 : index
    %0 = vector.load %arg1[%c0, %c0_0] : memref<2x32xf32, #tpu.memory_space<vmem>>, vector<2x32xf32>
    %c0_1 = arith.constant 0 : index
    %c0_2 = arith.constant 0 : index
    %1 = vector.load %arg4[%c0_1, %c0_2] : memref<32x32xf32, #tpu.memory_space<vmem>>, vector<32x32xf32>
    %cst = arith.constant dense<0.000000e+00> : vector<2x32xf32>
    %2 = tpu.matmul %0, %1, %cst {dimension_numbers = #tpu.dot_dimension_numbers<[1], [0], [0], [1], [0, 0, 1, 1], [], []>} : vector<2x32xf32>, vector<32x32xf32>, vector<2x32xf32> -> vector<2x32xf32>
    %c0_3 = arith.constant 0 : index
    %c0_4 = arith.constant 0 : index
    %3 = vector.load %arg5[%c0_3, %c0_4] : memref<1x32xf32, #tpu.memory_space<vmem>>, vector<1x32xf32>
    %4 = vector.broadcast %3 : vector<1x32xf32> to vector<2x32xf32>
    %5 = arith.addf %2, %4 : vector<2x32xf32>
    %cst_5 = arith.constant 0.000000e+00 : f32
    %6 = vector.broadcast %cst_5 : f32 to vector<2x32xf32>
    %7 = arith.maximumf %5, %6 : vector<2x32xf32>
    %c0_6 = arith.constant 0 : index
    %c0_7 = arith.constant 0 : index
    %8 = vector.load %arg6[%c0_6, %c0_7] : memref<32x32xf32, #tpu.memory_space<vmem>>, vector<32x32xf32>
    %cst_8 = arith.constant dense<0.000000e+00> : vector<2x32xf32>
    %9 = tpu.matmul %7, %8, %cst_8 {dimension_numbers = #tpu.dot_dimension_numbers<[1], [0], [0], [1], [0, 0, 1, 1], [], []>} : vector<2x32xf32>, vector<32x32xf32>, vector<2x32xf32> -> vector<2x32xf32>
    %c0_9 = arith.constant 0 : index
    %c0_10 = arith.constant 0 : index
    %10 = vector.load %arg7[%c0_9, %c0_10] : memref<1x32xf32, #tpu.memory_space<vmem>>, vector<1x32xf32>
    %11 = vector.broadcast %10 : vector<1x32xf32> to vector<2x32xf32>
    %12 = arith.addf %9, %11 : vector<2x32xf32>
    %c0_11 = arith.constant 0 : index
    %c0_12 = arith.constant 0 : index
    %13 = vector.load %arg10[%c0_11, %c0_12] : memref<32x32xf32, #tpu.memory_space<vmem>>, vector<32x32xf32>
    %cst_13 = arith.constant dense<0.000000e+00> : vector<2x32xf32>
    %14 = tpu.matmul %12, %13, %cst_13 {dimension_numbers = #tpu.dot_dimension_numbers<[1], [0], [0], [1], [0, 0, 1, 1], [], []>} : vector<2x32xf32>, vector<32x32xf32>, vector<2x32xf32> -> vector<2x32xf32>
    %c0_14 = arith.constant 0 : index
    %c0_15 = arith.constant 0 : index
    %15 = vector.load %arg11[%c0_14, %c0_15] : memref<32x1xf32, #tpu.memory_space<vmem>>, vector<32x1xf32>
    %cst_16 = arith.constant dense<0.000000e+00> : vector<2x1xf32>
    %16 = tpu.matmul %12, %15, %cst_16 {dimension_numbers = #tpu.dot_dimension_numbers<[1], [0], [0], [1], [0, 0, 1, 1], [], []>} : vector<2x32xf32>, vector<32x1xf32>, vector<2x1xf32> -> vector<2x1xf32>
    %c0_17 = arith.constant 0 : index
    %c0_18 = arith.constant 0 : index
    %c0_19 = arith.constant 0 : index
    %17 = vector.load %arg2[%c0_17, %c0_18, %c0_19] : memref<2x8x32xf32, #tpu.memory_space<vmem>>, vector<2x8x32xf32>
    %18 = vector.shape_cast %17 : vector<2x8x32xf32> to vector<16x32xf32>
    %c0_20 = arith.constant 0 : index
    %c0_21 = arith.constant 0 : index
    %19 = vector.load %arg8[%c0_20, %c0_21] : memref<32x32xf32, #tpu.memory_space<vmem>>, vector<32x32xf32>
    %cst_22 = arith.constant dense<0.000000e+00> : vector<16x32xf32>
    %20 = tpu.matmul %18, %19, %cst_22 {dimension_numbers = #tpu.dot_dimension_numbers<[1], [0], [0], [1], [0, 0, 1, 1], [], []>} : vector<16x32xf32>, vector<32x32xf32>, vector<16x32xf32> -> vector<16x32xf32>
    %c0_23 = arith.constant 0 : index
    %c0_24 = arith.constant 0 : index
    %21 = vector.load %arg9[%c0_23, %c0_24] : memref<1x32xf32, #tpu.memory_space<vmem>>, vector<1x32xf32>
    %22 = vector.broadcast %21 : vector<1x32xf32> to vector<16x32xf32>
    %23 = arith.addf %20, %22 : vector<16x32xf32>
    %cst_25 = arith.constant 0.000000e+00 : f32
    %24 = vector.broadcast %cst_25 : f32 to vector<16x32xf32>
    %25 = arith.maximumf %23, %24 : vector<16x32xf32>
    %26 = vector.shape_cast %25 : vector<16x32xf32> to vector<2x8x32xf32>
    %27 = vector.shape_cast %14 : vector<2x32xf32> to vector<2x1x32xf32>
    %28 = vector.broadcast %27 : vector<2x1x32xf32> to vector<2x8x32xf32>
    %29 = arith.mulf %26, %28 : vector<2x8x32xf32>
    %cst_26 = arith.constant dense<0.000000e+00> : vector<2x8xf32>
    %30 = vector.multi_reduction <add>, %29, %cst_26 [2] : vector<2x8x32xf32> to vector<2x8xf32>
    %31 = vector.broadcast %16 : vector<2x1xf32> to vector<2x8xf32>
    %32 = arith.addf %30, %31 : vector<2x8xf32>
    %c0_27 = arith.constant 0 : index
    %c0_28 = arith.constant 0 : index
    %33 = vector.load %arg3[%c0_27, %c0_28] : memref<2x8xi32, #tpu.memory_space<vmem>>, vector<2x8xi32>
    %c0_i32 = arith.constant 0 : i32
    %34 = vector.broadcast %c0_i32 : i32 to vector<2x8xi32>
    %35 = arith.cmpi ne, %33, %34 : vector<2x8xi32>
    %cst_29 = arith.constant -3.40282347E+38 : f32
    %36 = vector.broadcast %cst_29 : f32 to vector<2x8xf32>
    %37 = arith.select %35, %32, %36 : vector<2x8xi1>, vector<2x8xf32>
    %c0_30 = arith.constant 0 : index
    %c0_31 = arith.constant 0 : index
    %38 = vector.load %arg12[%c0_30, %c0_31] : memref<2x8xf32, #tpu.memory_space<vmem>>, vector<2x8xf32>
    tpu.vector_store %arg12[%c0_30, %c0_31], %37 {strides = array<i32>} : memref<2x8xf32, #tpu.memory_space<vmem>>, vector<2x8xf32>,
    return
  }
  func.func @transform_0(%arg0: i32) -> (i32, i32) {
    %c0_i32 = arith.constant 0 : i32
    %c0_i32_0 = arith.constant 0 : i32
    return %arg0, %c0_i32 : i32, i32
  }
  func.func @transform_1(%arg0: i32) -> (i32, i32, i32) {
    %c0_i32 = arith.constant 0 : i32
    %c0_i32_0 = arith.constant 0 : i32
    %c0_i32_1 = arith.constant 0 : i32
    return %arg0, %c0_i32, %c0_i32_0 : i32, i32, i32
  }
  func.func @transform_2(%arg0: i32) -> (i32, i32) {
    %c0_i32 = arith.constant 0 : i32
    %c0_i32_0 = arith.constant 0 : i32
    return %arg0, %c0_i32 : i32, i32
  }
  func.func @transform_3(%arg0: i32) -> (i32, i32) {
    %c0_i32 = arith.constant 0 : i32
    %c0_i32_0 = arith.constant 0 : i32
    %c0_i32_1 = arith.constant 0 : i32
    return %c0_i32, %c0_i32_0 : i32, i32
  }
  func.func @transform_4(%arg0: i32) -> (i32, i32) {
    %c0_i32 = arith.constant 0 : i32
    %c0_i32_0 = arith.constant 0 : i32
    %c0_i32_1 = arith.constant 0 : i32
    return %c0_i32, %c0_i32_0 : i32, i32
  }
  func.func @transform_5(%arg0: i32) -> (i32, i32) {
    %c0_i32 = arith.constant 0 : i32
    %c0_i32_0 = arith.constant 0 : i32
    %c0_i32_1 = arith.constant 0 : i32
    return %c0_i32, %c0_i32_0 : i32, i32
  }
  func.func @transform_6(%arg0: i32) -> (i32, i32) {
    %c0_i32 = arith.constant 0 : i32
    %c0_i32_0 = arith.constant 0 : i32
    %c0_i32_1 = arith.constant 0 : i32
    return %c0_i32, %c0_i32_0 : i32, i32
  }
  func.func @transform_7(%arg0: i32) -> (i32, i32) {
    %c0_i32 = arith.constant 0 : i32
    %c0_i32_0 = arith.constant 0 : i32
    %c0_i32_1 = arith.constant 0 : i32
    return %c0_i32, %c0_i32_0 : i32, i32
  }
  func.func @transform_8(%arg0: i32) -> (i32, i32) {
    %c0_i32 = arith.constant 0 : i32
    %c0_i32_0 = arith.constant 0 : i32
    %c0_i32_1 = arith.constant 0 : i32
    return %c0_i32, %c0_i32_0 : i32, i32
  }
  func.func @transform_9(%arg0: i32) -> (i32, i32) {
    %c0_i32 = arith.constant 0 : i32
    %c0_i32_0 = arith.constant 0 : i32
    %c0_i32_1 = arith.constant 0 : i32
    return %c0_i32, %c0_i32_0 : i32, i32
  }
  func.func @transform_10(%arg0: i32) -> (i32, i32) {
    %c0_i32 = arith.constant 0 : i32
    %c0_i32_0 = arith.constant 0 : i32
    %c0_i32_1 = arith.constant 0 : i32
    return %c0_i32, %c0_i32_0 : i32, i32
  }
  func.func @transform_11(%arg0: i32) -> (i32, i32) {
    %c0_i32 = arith.constant 0 : i32
    %c0_i32_0 = arith.constant 0 : i32
    return %arg0, %c0_i32 : i32, i32
  }
}

</mosaic_0001>

<llo_original>
// kernel: tpu_custom_call.1
$region0: #{tpu_custom_call.1}
  #allocation0 [shape = 'u32[]', space=smem, size = 0x4, offset = 0x4, fixed_abs, tag = 'smem constant byte address 0x4 - core index']
  #allocation1 [shape = 'u32[144,128]{1,0:T(1,128)}', space=vmem, size = 0x12000, scoped, tag = 'internal scratch']
  %s0 = inlined_call_operand.vmem [shape: f32[2,32], index: 0, kind: input, shape index: {}]
  %s1 = inlined_call_operand.hbm [shape: f32[2,8,32], index: 1, kind: input, shape index: {}]
  %s2 = inlined_call_operand.hbm [shape: s32[2,8], index: 2, kind: input, shape index: {}]
  %s3 = inlined_call_operand.vmem [shape: f32[32,32], index: 3, kind: input, shape index: {}]
  %s4 = inlined_call_operand.vmem [shape: f32[1,32], index: 4, kind: input, shape index: {}]
  %s5 = inlined_call_operand.hbm [shape: f32[32,32], index: 5, kind: input, shape index: {}]
  %s6 = inlined_call_operand.hbm [shape: f32[1,32], index: 6, kind: input, shape index: {}]
  %s7 = inlined_call_operand.hbm [shape: f32[32,32], index: 7, kind: input, shape index: {}]
  %s8 = inlined_call_operand.hbm [shape: f32[1,32], index: 8, kind: input, shape index: {}]
  %s9 = inlined_call_operand.vmem [shape: f32[32,32], index: 9, kind: input, shape index: {}]
  %s10 = inlined_call_operand.vmem [shape: f32[32,1], index: 10, kind: input, shape index: {}]
  %s11 = inlined_call_operand.hbm [shape: f32[2,8], index: 11, kind: output, shape index: {}]
  %s12 = sld [smem:[#allocation0]]
  $region78: #{tpu_custom_call.1} parent=0
    _
  %s14 = ssub.s32 1, %s12
  %s15 = scalar_select 0, %s14, %s12
  $region1: #{tpu_custom_call.1} parent=0
    #allocation2 [shape = 'u8[8192]{0}', space=vmem, size = 0x2000, scoped, tag = 'input window, operand 1, single buffered']
    #allocation3 [shape = 's32[1]{0}', space=sflag, size = 0x4, scoped, tag = 'scoped memory for tpu_custom_call.1']
    #allocation4 [shape = 's32[1]{0}', space=sflag, size = 0x4, scoped, tag = 'scoped memory for tpu_custom_call.1']
    #allocation5 [shape = 'u8[1024]{0}', space=vmem, size = 0x400, scoped, tag = 'input window, operand 2, single buffered']
    #allocation6 [shape = 's32[1]{0}', space=sflag, size = 0x4, scoped, tag = 'scoped memory for tpu_custom_call.1']
    #allocation7 [shape = 'u8[16384]{0}', space=vmem, size = 0x4000, scoped, tag = 'input window, operand 5, single buffered']
    #allocation8 [shape = 'u8[512]{0}', space=vmem, size = 0x400, scoped, tag = 'input window, operand 6, single buffered']
    #allocation9 [shape = 's32[1]{0}', space=sflag, size = 0x4, scoped, tag = 'scoped memory for tpu_custom_call.1']
    #allocation10 [shape = 'u8[16384]{0}', space=vmem, size = 0x4000, scoped, tag = 'input window, operand 7, single buffered']
    #allocation11 [shape = 'u8[512]{0}', space=vmem, size = 0x400, scoped, tag = 'input window, operand 8, single buffered']
    #allocation12 [shape = 's32[1]{0}', space=sflag, size = 0x4, scoped, tag = 'scoped memory for tpu_custom_call.1']
    #allocation13 [shape = 'u8[1024]{0}', space=vmem, size = 0x400, scoped, tag = 'output window, operand 0, single buffered']
    %16 = vsyncpa [#allocation3], 0
    %17 = vsyncpa [#allocation6], 0
    %18 = vsyncpa [#allocation9], 0
    %19 = vsyncpa [#allocation12], 0
    %20 = vsyncpa [#allocation4], 0
    // Predicated region
    $region2: #{tpu_custom_call.1} parent=1 // pred_check
      _
    $region3: #{tpu_custom_call.1} parent=1 // pred_check_branch
      %22 = sbr.rel (0) target = $region5
    $region4: #{tpu_custom_call.1} parent=1 // pred_region
      _
    $region5: #{tpu_custom_call.1} parent=1 // pred_fallthru
      _
    // Predicated region
    $region6: #{tpu_custom_call.1} parent=1 // pred_check
      _
    $region7: #{tpu_custom_call.1} parent=1 // pred_check_branch
      %24 = sbr.rel (0) target = $region9
    $region8: #{tpu_custom_call.1} parent=1 // pred_region
      %s26 = ssub.s32 256, 256
      %27 = vsyncadd [#allocation3], %s26
      %s28 = sshll.u32 [#allocation2], 4
      %s29 = int_to_ptr.vmem [resolvable:$true] %s28
      %34 = dma.hbm_to_vmem [thread:$0]  %s1, 256, %s29, [#allocation3], 128, 128, 8
    $region9: #{tpu_custom_call.1} parent=1 // pred_fallthru
      _
    // Predicated region
    $region10: #{tpu_custom_call.1} parent=1 // pred_check
      _
    $region11: #{tpu_custom_call.1} parent=1 // pred_check_branch
      %36 = sbr.rel (0) target = $region13
    $region12: #{tpu_custom_call.1} parent=1 // pred_region
      %s38 = ssub.s32 32, 32
      %39 = vsyncadd [#allocation6], %s38
      %s41 = sshll.u32 [#allocation5], 4
      %s42 = int_to_ptr.vmem [resolvable:$true] %s41
      %44 = dma.hbm_to_vmem [thread:$0]  %s2, 32, %s42, [#allocation6]
    $region13: #{tpu_custom_call.1} parent=1 // pred_fallthru
      _
    // Predicated region
    $region14: #{tpu_custom_call.1} parent=1 // pred_check
      _
    $region15: #{tpu_custom_call.1} parent=1 // pred_check_branch
      %46 = sbr.rel (0) target = $region17
    $region16: #{tpu_custom_call.1} parent=1 // pred_region
      _
    $region17: #{tpu_custom_call.1} parent=1 // pred_fallthru
      _
    // Predicated region
    $region18: #{tpu_custom_call.1} parent=1 // pred_check
      _
    $region19: #{tpu_custom_call.1} parent=1 // pred_check_branch
      %48 = sbr.rel (0) target = $region21
    $region20: #{tpu_custom_call.1} parent=1 // pred_region
      _
    $region21: #{tpu_custom_call.1} parent=1 // pred_fallthru
      _
    // Predicated region
    $region22: #{tpu_custom_call.1} parent=1 // pred_check
      _
    $region23: #{tpu_custom_call.1} parent=1 // pred_check_branch
      %50 = sbr.rel (0) target = $region25
    $region24: #{tpu_custom_call.1} parent=1 // pred_region
      %s52 = ssub.s32 512, 512
      %53 = vsyncadd [#allocation6], %s52
      %s54 = sshll.u32 [#allocation7], 4
      %s55 = int_to_ptr.vmem [resolvable:$true] %s54
      %60 = dma.hbm_to_vmem [thread:$0]  %s5, 512, %s55, [#allocation6], 128, 128, 8
    $region25: #{tpu_custom_call.1} parent=1 // pred_fallthru
      _
    // Predicated region
    $region26: #{tpu_custom_call.1} parent=1 // pred_check
      _
    $region27: #{tpu_custom_call.1} parent=1 // pred_check_branch
      %62 = sbr.rel (0) target = $region29
    $region28: #{tpu_custom_call.1} parent=1 // pred_region
      %s64 = ssub.s32 16, 16
      %65 = vsyncadd [#allocation9], %s64
      %s67 = sshll.u32 [#allocation8], 4
      %s68 = int_to_ptr.vmem [resolvable:$true] %s67
      %70 = dma.hbm_to_vmem [thread:$0]  %s6, 16, %s68, [#allocation9]
    $region29: #{tpu_custom_call.1} parent=1 // pred_fallthru
      _
    // Predicated region
    $region30: #{tpu_custom_call.1} parent=1 // pred_check
      _
    $region31: #{tpu_custom_call.1} parent=1 // pred_check_branch
      %72 = sbr.rel (0) target = $region33
    $region32: #{tpu_custom_call.1} parent=1 // pred_region
      %s74 = ssub.s32 512, 512
      %75 = vsyncadd [#allocation9], %s74
      %s76 = sshll.u32 [#allocation10], 4
      %s77 = int_to_ptr.vmem [resolvable:$true] %s76
      %82 = dma.hbm_to_vmem [thread:$0]  %s7, 512, %s77, [#allocation9], 128, 128, 8
    $region33: #{tpu_custom_call.1} parent=1 // pred_fallthru
      _
    // Predicated region
    $region34: #{tpu_custom_call.1} parent=1 // pred_check
      _
    $region35: #{tpu_custom_call.1} parent=1 // pred_check_branch
      %84 = sbr.rel (0) target = $region37
    $region36: #{tpu_custom_call.1} parent=1 // pred_region
      %s86 = ssub.s32 16, 16
      %87 = vsyncadd [#allocation12], %s86
      %s89 = sshll.u32 [#allocation11], 4
      %s90 = int_to_ptr.vmem [resolvable:$true] %s89
      %92 = dma.hbm_to_vmem [thread:$0]  %s8, 16, %s90, [#allocation12]
    $region37: #{tpu_custom_call.1} parent=1 // pred_fallthru
      _
    // Predicated region
    $region38: #{tpu_custom_call.1} parent=1 // pred_check
      _
    $region39: #{tpu_custom_call.1} parent=1 // pred_check_branch
      %94 = sbr.rel (0) target = $region41
    $region40: #{tpu_custom_call.1} parent=1 // pred_region
      _
    $region41: #{tpu_custom_call.1} parent=1 // pred_fallthru
      _
    // Predicated region
    $region42: #{tpu_custom_call.1} parent=1 // pred_check
      _
    $region43: #{tpu_custom_call.1} parent=1 // pred_check_branch
      %96 = sbr.rel (0) target = $region45
    $region44: #{tpu_custom_call.1} parent=1 // pred_region
      _
    $region45: #{tpu_custom_call.1} parent=1 // pred_fallthru
      _
    // Predicated region
    $region46: #{tpu_custom_call.1} parent=1 // pred_check
      _
    $region47: #{tpu_custom_call.1} parent=1 // pred_check_branch
      %98 = sbr.rel (0) target = $region49
    $region48: #{tpu_custom_call.1} parent=1 // pred_region
      %99 = dma.done [#allocation3], 256
    $region49: #{tpu_custom_call.1} parent=1 // pred_fallthru
      _
    // Predicated region
    $region50: #{tpu_custom_call.1} parent=1 // pred_check
      _
    $region51: #{tpu_custom_call.1} parent=1 // pred_check_branch
      %101 = sbr.rel (0) target = $region53
    $region52: #{tpu_custom_call.1} parent=1 // pred_region
      %102 = dma.done [#allocation6], 32
    $region53: #{tpu_custom_call.1} parent=1 // pred_fallthru
      _
    // Predicated region
    $region54: #{tpu_custom_call.1} parent=1 // pred_check
      _
    $region55: #{tpu_custom_call.1} parent=1 // pred_check_branch
      %104 = sbr.rel (0) target = $region57
    $region56: #{tpu_custom_call.1} parent=1 // pred_region
      %105 = dma.done [#allocation6], 512
    $region57: #{tpu_custom_call.1} parent=1 // pred_fallthru
      _
    // Predicated region
    $region58: #{tpu_custom_call.1} parent=1 // pred_check
      _
    $region59: #{tpu_custom_call.1} parent=1 // pred_check_branch
      %107 = sbr.rel (0) target = $region61
    $region60: #{tpu_custom_call.1} parent=1 // pred_region
      %108 = dma.done [#allocation9], 16
    $region61: #{tpu_custom_call.1} parent=1 // pred_fallthru
      _
    // Predicated region
    $region62: #{tpu_custom_call.1} parent=1 // pred_check
      _
    $region63: #{tpu_custom_call.1} parent=1 // pred_check_branch
      %110 = sbr.rel (0) target = $region65
    $region64: #{tpu_custom_call.1} parent=1 // pred_region
      %111 = dma.done [#allocation9], 512
    $region65: #{tpu_custom_call.1} parent=1 // pred_fallthru
      _
    // Predicated region
    $region66: #{tpu_custom_call.1} parent=1 // pred_check
      _
    $region67: #{tpu_custom_call.1} parent=1 // pred_check_branch
      %113 = sbr.rel (0) target = $region69
    $region68: #{tpu_custom_call.1} parent=1 // pred_region
      %114 = dma.done [#allocation12], 16
    $region69: #{tpu_custom_call.1} parent=1 // pred_fallthru
      _
    %v115 = vld [vmem:[%s0] sm:$0x3]
    %v116 = vld [vmem:[%s3] sm:$0xff]
    %v117 = vld [vmem:[%s3 + $0x8] sm:$0xff]
    %v118 = vld [vmem:[%s3 + $0x10] sm:$0xff]
    %v119 = vld [vmem:[%s3 + $0x18] sm:$0xff]
    %v120 = vld [vmem:[%s4] sm:$0x1]
    %v122 = vlaneseq
    %v123 = vshrl.u32 %v122, 7
    %v124 = vsub.s32 0, %v123
    %v125 = vrot.slane %v120, %v124
    %vm127 = vcmask 261120
    %v129 = vsel %vm127, %v115, 0
    %131 = vmatprep.subr.mxu0 0.0
    %132 = vmatpush1.msra.mxu0 %v116
    %133 = vmatprep.subr.mxu0 0.0
    %134 = vmatpush1.msra.mxu0 %v117
    %135 = vmatprep.subr.mxu0 0.0
    %136 = vmatpush1.msra.mxu0 %v118
    %137 = vmatprep.subr.mxu0 0.0
    %138 = vmatpush1.msra.mxu0 %v119
    %139 = vmatprep.subr.mxu0 0.0
    %140 = vmatpush1.msra.mxu0 0.0
    %141 = vmatprep.subr.mxu0 0.0
    %142 = vmatpush1.msra.mxu0 0.0
    %143 = vmatprep.subr.mxu0 0.0
    %144 = vmatpush1.msra.mxu0 0.0
    %145 = vmatprep.subr.mxu0 0.0
    %146 = vmatpush1.msra.mxu0 0.0
    %147 = vmatprep.subr.mxu0 0.0
    %148 = vmatpush1.msra.mxu0 0.0
    %149 = vmatprep.subr.mxu0 0.0
    %150 = vmatpush1.msra.mxu0 0.0
    %151 = vmatprep.subr.mxu0 0.0
    %152 = vmatpush1.msra.mxu0 0.0
    %153 = vmatprep.subr.mxu0 0.0
    %154 = vmatpush1.msra.mxu0 0.0
    %155 = vmatprep.subr.mxu0 0.0
    %156 = vmatpush1.msra.mxu0 0.0
    %157 = vmatprep.subr.mxu0 0.0
    %158 = vmatpush1.msra.mxu0 0.0
    %159 = vmatprep.subr.mxu0 0.0
    %160 = vmatpush1.msra.mxu0 0.0
    %161 = vmatprep.subr.mxu0 0.0
    %162 = vmatpush1.msra.mxu0 0.0
    %163 = vmatprep.subr.mxu0 0.0
    %164 = vmatpush1.msra.mxu0 0.0
    %165 = vmatprep.subr.mxu0 0.0
    %166 = vmatpush1.msra.mxu0 0.0
    %167 = vmatprep.subr.mxu0 0.0
    %168 = vmatpush1.msra.mxu0 0.0
    %169 = vmatprep.subr.mxu0 0.0
    %170 = vmatpush1.msra.mxu0 0.0
    %171 = vmatprep.subr.mxu0 0.0
    %172 = vmatpush1.msra.mxu0 0.0
    %173 = vmatprep.subr.mxu0 0.0
    %174 = vmatpush1.msra.mxu0 0.0
    %175 = vmatprep.subr.mxu0 0.0
    %176 = vmatpush1.msra.mxu0 0.0
    %177 = vmatprep.subr.mxu0 0.0
    %178 = vmatpush1.msra.mxu0 0.0
    %179 = vmatprep.subr.mxu0 0.0
    %180 = vmatpush1.msra.mxu0 0.0
    %181 = vmatprep.subr.mxu0 0.0
    %182 = vmatpush1.msra.mxu0 0.0
    %183 = vmatprep.subr.mxu0 0.0
    %184 = vmatpush1.msra.mxu0 0.0
    %185 = vmatprep.subr.mxu0 0.0
    %186 = vmatpush1.msra.mxu0 0.0
    %187 = vmatprep.subr.mxu0 0.0
    %188 = vmatpush1.msra.mxu0 0.0
    %189 = vmatprep.subr.mxu0 0.0
    %190 = vmatpush1.msra.mxu0 0.0
    %191 = vmatprep.subr.mxu0 0.0
    %192 = vmatpush1.msra.mxu0 0.0
    %193 = vmatprep.subr.mxu0 0.0
    %194 = vmatpush1.msra.mxu0 0.0
    %195 = vmatprep.mubr.f32.mxu0 0.0
    %196 = vmatmul.mubr.f32.gmra.mrb[0].mxu0 %v129
    %v197 = vpop.f32.mrb[0].mxu0
    %v198 = vadd.f32 %v125, %v197
    %v199 = vpop.f32.mrb[0].mxu0
    %200 = vdwg.mxu0
    %v201 = vmax.f32 %v198, 0.0
    %v202 = vld [vmem:[#allocation7] sm:$0xff]
    %v203 = vld [vmem:[#allocation7 + $0x8] sm:$0xff]
    %v204 = vld [vmem:[#allocation7 + $0x10] sm:$0xff]
    %v205 = vld [vmem:[#allocation7 + $0x18] sm:$0xff]
    %v206 = vld [vmem:[#allocation8] sm:$0x1]
    %v208 = vlaneseq
    %v209 = vshrl.u32 %v208, 7
    %v210 = vsub.s32 0, %v209
    %v211 = vrot.slane %v206, %v210
    %v214 = vsel %vm127, %v201, 0
    %216 = vmatprep.subr.mxu0 0.0
    %217 = vmatpush1.msra.mxu0 %v202
    %218 = vmatprep.subr.mxu0 0.0
    %219 = vmatpush1.msra.mxu0 %v203
    %220 = vmatprep.subr.mxu0 0.0
    %221 = vmatpush1.msra.mxu0 %v204
    %222 = vmatprep.subr.mxu0 0.0
    %223 = vmatpush1.msra.mxu0 %v205
    %224 = vmatprep.subr.mxu0 0.0
    %225 = vmatpush1.msra.mxu0 0.0
    %226 = vmatprep.subr.mxu0 0.0
    %227 = vmatpush1.msra.mxu0 0.0
    %228 = vmatprep.subr.mxu0 0.0
    %229 = vmatpush1.msra.mxu0 0.0
    %230 = vmatprep.subr.mxu0 0.0
    %231 = vmatpush1.msra.mxu0 0.0
    %232 = vmatprep.subr.mxu0 0.0
    %233 = vmatpush1.msra.mxu0 0.0
    %234 = vmatprep.subr.mxu0 0.0
    %235 = vmatpush1.msra.mxu0 0.0
    %236 = vmatprep.subr.mxu0 0.0
    %237 = vmatpush1.msra.mxu0 0.0
    %238 = vmatprep.subr.mxu0 0.0
    %239 = vmatpush1.msra.mxu0 0.0
    %240 = vmatprep.subr.mxu0 0.0
    %241 = vmatpush1.msra.mxu0 0.0
    %242 = vmatprep.subr.mxu0 0.0
    %243 = vmatpush1.msra.mxu0 0.0
    %244 = vmatprep.subr.mxu0 0.0
    %245 = vmatpush1.msra.mxu0 0.0
    %246 = vmatprep.subr.mxu0 0.0
    %247 = vmatpush1.msra.mxu0 0.0
    %248 = vmatprep.subr.mxu0 0.0
    %249 = vmatpush1.msra.mxu0 0.0
    %250 = vmatprep.subr.mxu0 0.0
    %251 = vmatpush1.msra.mxu0 0.0
    %252 = vmatprep.subr.mxu0 0.0
    %253 = vmatpush1.msra.mxu0 0.0
    %254 = vmatprep.subr.mxu0 0.0
    %255 = vmatpush1.msra.mxu0 0.0
    %256 = vmatprep.subr.mxu0 0.0
    %257 = vmatpush1.msra.mxu0 0.0
    %258 = vmatprep.subr.mxu0 0.0
    %259 = vmatpush1.msra.mxu0 0.0
    %260 = vmatprep.subr.mxu0 0.0
    %261 = vmatpush1.msra.mxu0 0.0
    %262 = vmatprep.subr.mxu0 0.0
    %263 = vmatpush1.msra.mxu0 0.0
    %264 = vmatprep.subr.mxu0 0.0
    %265 = vmatpush1.msra.mxu0 0.0
    %266 = vmatprep.subr.mxu0 0.0
    %267 = vmatpush1.msra.mxu0 0.0
    %268 = vmatprep.subr.mxu0 0.0
    %269 = vmatpush1.msra.mxu0 0.0
    %270 = vmatprep.subr.mxu0 0.0
    %271 = vmatpush1.msra.mxu0 0.0
    %272 = vmatprep.subr.mxu0 0.0
    %273 = vmatpush1.msra.mxu0 0.0
    %274 = vmatprep.subr.mxu0 0.0
    %275 = vmatpush1.msra.mxu0 0.0
    %276 = vmatprep.subr.mxu0 0.0
    %277 = vmatpush1.msra.mxu0 0.0
    %278 = vmatprep.subr.mxu0 0.0
    %279 = vmatpush1.msra.mxu0 0.0
    %280 = vmatprep.mubr.f32.mxu0 0.0
    %281 = vmatmul.mubr.f32.gmra.mrb[0].mxu0 %v214
    %v282 = vpop.f32.mrb[0].mxu0
    %v283 = vadd.f32 %v211, %v282
    %v284 = vpop.f32.mrb[0].mxu0
    %285 = vdwg.mxu0
    %v286 = vld [vmem:[%s9] sm:$0xff]
    %v287 = vld [vmem:[%s9 + $0x8] sm:$0xff]
    %v288 = vld [vmem:[%s9 + $0x10] sm:$0xff]
    %v289 = vld [vmem:[%s9 + $0x18] sm:$0xff]
    %v291 = vsel %vm127, %v283, 0
    %293 = vmatprep.subr.mxu0 0.0
    %294 = vmatpush1.msra.mxu0 %v286
    %295 = vmatprep.subr.mxu0 0.0
    %296 = vmatpush1.msra.mxu0 %v287
    %297 = vmatprep.subr.mxu0 0.0
    %298 = vmatpush1.msra.mxu0 %v288
    %299 = vmatprep.subr.mxu0 0.0
    %300 = vmatpush1.msra.mxu0 %v289
    %301 = vmatprep.subr.mxu0 0.0
    %302 = vmatpush1.msra.mxu0 0.0
    %303 = vmatprep.subr.mxu0 0.0
    %304 = vmatpush1.msra.mxu0 0.0
    %305 = vmatprep.subr.mxu0 0.0
    %306 = vmatpush1.msra.mxu0 0.0
    %307 = vmatprep.subr.mxu0 0.0
    %308 = vmatpush1.msra.mxu0 0.0
    %309 = vmatprep.subr.mxu0 0.0
    %310 = vmatpush1.msra.mxu0 0.0
    %311 = vmatprep.subr.mxu0 0.0
    %312 = vmatpush1.msra.mxu0 0.0
    %313 = vmatprep.subr.mxu0 0.0
    %314 = vmatpush1.msra.mxu0 0.0
    %315 = vmatprep.subr.mxu0 0.0
    %316 = vmatpush1.msra.mxu0 0.0
    %317 = vmatprep.subr.mxu0 0.0
    %318 = vmatpush1.msra.mxu0 0.0
    %319 = vmatprep.subr.mxu0 0.0
    %320 = vmatpush1.msra.mxu0 0.0
    %321 = vmatprep.subr.mxu0 0.0
    %322 = vmatpush1.msra.mxu0 0.0
    %323 = vmatprep.subr.mxu0 0.0
    %324 = vmatpush1.msra.mxu0 0.0
    %325 = vmatprep.subr.mxu0 0.0
    %326 = vmatpush1.msra.mxu0 0.0
    %327 = vmatprep.subr.mxu0 0.0
    %328 = vmatpush1.msra.mxu0 0.0
    %329 = vmatprep.subr.mxu0 0.0
    %330 = vmatpush1.msra.mxu0 0.0
    %331 = vmatprep.subr.mxu0 0.0
    %332 = vmatpush1.msra.mxu0 0.0
    %333 = vmatprep.subr.mxu0 0.0
    %334 = vmatpush1.msra.mxu0 0.0
    %335 = vmatprep.subr.mxu0 0.0
    %336 = vmatpush1.msra.mxu0 0.0
    %337 = vmatprep.subr.mxu0 0.0
    %338 = vmatpush1.msra.mxu0 0.0
    %339 = vmatprep.subr.mxu0 0.0
    %340 = vmatpush1.msra.mxu0 0.0
    %341 = vmatprep.subr.mxu0 0.0
    %342 = vmatpush1.msra.mxu0 0.0
    %343 = vmatprep.subr.mxu0 0.0
    %344 = vmatpush1.msra.mxu0 0.0
    %345 = vmatprep.subr.mxu0 0.0
    %346 = vmatpush1.msra.mxu0 0.0
    %347 = vmatprep.subr.mxu0 0.0
    %348 = vmatpush1.msra.mxu0 0.0
    %349 = vmatprep.subr.mxu0 0.0
    %350 = vmatpush1.msra.mxu0 0.0
    %351 = vmatprep.subr.mxu0 0.0
    %352 = vmatpush1.msra.mxu0 0.0
    %353 = vmatprep.subr.mxu0 0.0
    %354 = vmatpush1.msra.mxu0 0.0
    %355 = vmatprep.subr.mxu0 0.0
    %356 = vmatpush1.msra.mxu0 0.0
    %357 = vmatprep.mubr.f32.mxu0 0.0
    %358 = vmatmul.mubr.f32.gmra.mrb[0].mxu0 %v291
    %v359 = vpop.f32.mrb[0].mxu0
    %v360 = vadd.f32 0.0, %v359
    %v361 = vpop.f32.mrb[0].mxu0
    %362 = vdwg.mxu0
    %v363 = vld [vmem:[%s10] sm:$0xff]
    %v364 = vld [vmem:[%s10 + $0x8] sm:$0xff]
    %v365 = vld [vmem:[%s10 + $0x10] sm:$0xff]
    %v366 = vld [vmem:[%s10 + $0x18] sm:$0xff]
    %367 = vmatprep.subr.mxu0 0.0
    %368 = vmatpush1.msra.mxu0 %v363
    %369 = vmatprep.subr.mxu0 0.0
    %370 = vmatpush1.msra.mxu0 %v364
    %371 = vmatprep.subr.mxu0 0.0
    %372 = vmatpush1.msra.mxu0 %v365
    %373 = vmatprep.subr.mxu0 0.0
    %374 = vmatpush1.msra.mxu0 %v366
    %375 = vmatprep.subr.mxu0 0.0
    %376 = vmatpush1.msra.mxu0 0.0
    %377 = vmatprep.subr.mxu0 0.0
    %378 = vmatpush1.msra.mxu0 0.0
    %379 = vmatprep.subr.mxu0 0.0
    %380 = vmatpush1.msra.mxu0 0.0
    %381 = vmatprep.subr.mxu0 0.0
    %382 = vmatpush1.msra.mxu0 0.0
    %383 = vmatprep.subr.mxu0 0.0
    %384 = vmatpush1.msra.mxu0 0.0
    %385 = vmatprep.subr.mxu0 0.0
    %386 = vmatpush1.msra.mxu0 0.0
    %387 = vmatprep.subr.mxu0 0.0
    %388 = vmatpush1.msra.mxu0 0.0
    %389 = vmatprep.subr.mxu0 0.0
    %390 = vmatpush1.msra.mxu0 0.0
    %391 = vmatprep.subr.mxu0 0.0
    %392 = vmatpush1.msra.mxu0 0.0
    %393 = vmatprep.subr.mxu0 0.0
    %394 = vmatpush1.msra.mxu0 0.0
    %395 = vmatprep.subr.mxu0 0.0
    %396 = vmatpush1.msra.mxu0 0.0
    %397 = vmatprep.subr.mxu0 0.0
    %398 = vmatpush1.msra.mxu0 0.0
    %399 = vmatprep.subr.mxu0 0.0
    %400 = vmatpush1.msra.mxu0 0.0
    %401 = vmatprep.subr.mxu0 0.0
    %402 = vmatpush1.msra.mxu0 0.0
    %403 = vmatprep.subr.mxu0 0.0
    %404 = vmatpush1.msra.mxu0 0.0
    %405 = vmatprep.subr.mxu0 0.0
    %406 = vmatpush1.msra.mxu0 0.0
    %407 = vmatprep.subr.mxu0 0.0
    %408 = vmatpush1.msra.mxu0 0.0
    %409 = vmatprep.subr.mxu0 0.0
    %410 = vmatpush1.msra.mxu0 0.0
    %411 = vmatprep.subr.mxu0 0.0
    %412 = vmatpush1.msra.mxu0 0.0
    %413 = vmatprep.subr.mxu0 0.0
    %414 = vmatpush1.msra.mxu0 0.0
    %415 = vmatprep.subr.mxu0 0.0
    %416 = vmatpush1.msra.mxu0 0.0
    %417 = vmatprep.subr.mxu0 0.0
    %418 = vmatpush1.msra.mxu0 0.0
    %419 = vmatprep.subr.mxu0 0.0
    %420 = vmatpush1.msra.mxu0 0.0
    %421 = vmatprep.subr.mxu0 0.0
    %422 = vmatpush1.msra.mxu0 0.0
    %423 = vmatprep.subr.mxu0 0.0
    %424 = vmatpush1.msra.mxu0 0.0
    %425 = vmatprep.subr.mxu0 0.0
    %426 = vmatpush1.msra.mxu0 0.0
    %427 = vmatprep.subr.mxu0 0.0
    %428 = vmatpush1.msra.mxu0 0.0
    %429 = vmatprep.subr.mxu0 0.0
    %430 = vmatpush1.msra.mxu0 0.0
    %431 = vmatprep.mubr.f32.mxu0 0.0
    %432 = vmatmul.mubr.f32.gmra.mrb[0].mxu0 %v291
    %v433 = vpop.f32.mrb[0].mxu0
    %v434 = vadd.f32 0.0, %v433
    %v435 = vpop.f32.mrb[0].mxu0
    %436 = vdwg.mxu0
    %v437 = vld [vmem:[#allocation2] sm:$0xff]
    %v438 = vld [vmem:[#allocation2 + $0x8] sm:$0xff]
    %v439 = vld [vmem:[#allocation10] sm:$0xff]
    %v440 = vld [vmem:[#allocation10 + $0x8] sm:$0xff]
    %v441 = vld [vmem:[#allocation10 + $0x10] sm:$0xff]
    %v442 = vld [vmem:[#allocation10 + $0x18] sm:$0xff]
    %v443 = vld [vmem:[#allocation11] sm:$0x1]
    %v445 = vlaneseq
    %v446 = vshrl.u32 %v445, 7
    %v447 = vsub.s32 0, %v446
    %v448 = vrot.slane %v443, %v447
    %v451 = vsel %vm127, %v437, 0
    %v454 = vsel %vm127, %v438, 0
    %456 = vmatprep.subr.mxu0 0.0
    %457 = vmatpush1.msra.mxu0 %v439
    %458 = vmatprep.subr.mxu0 0.0
    %459 = vmatpush1.msra.mxu0 %v440
    %460 = vmatprep.subr.mxu0 0.0
    %461 = vmatpush1.msra.mxu0 %v441
    %462 = vmatprep.subr.mxu0 0.0
    %463 = vmatpush1.msra.mxu0 %v442
    %464 = vmatprep.subr.mxu0 0.0
    %465 = vmatpush1.msra.mxu0 0.0
    %466 = vmatprep.subr.mxu0 0.0
    %467 = vmatpush1.msra.mxu0 0.0
    %468 = vmatprep.subr.mxu0 0.0
    %469 = vmatpush1.msra.mxu0 0.0
    %470 = vmatprep.subr.mxu0 0.0
    %471 = vmatpush1.msra.mxu0 0.0
    %472 = vmatprep.subr.mxu0 0.0
    %473 = vmatpush1.msra.mxu0 0.0
    %474 = vmatprep.subr.mxu0 0.0
    %475 = vmatpush1.msra.mxu0 0.0
    %476 = vmatprep.subr.mxu0 0.0
    %477 = vmatpush1.msra.mxu0 0.0
    %478 = vmatprep.subr.mxu0 0.0
    %479 = vmatpush1.msra.mxu0 0.0
    %480 = vmatprep.subr.mxu0 0.0
    %481 = vmatpush1.msra.mxu0 0.0
    %482 = vmatprep.subr.mxu0 0.0
    %483 = vmatpush1.msra.mxu0 0.0
    %484 = vmatprep.subr.mxu0 0.0
    %485 = vmatpush1.msra.mxu0 0.0
    %486 = vmatprep.subr.mxu0 0.0
    %487 = vmatpush1.msra.mxu0 0.0
    %488 = vmatprep.subr.mxu0 0.0
    %489 = vmatpush1.msra.mxu0 0.0
    %490 = vmatprep.subr.mxu0 0.0
    %491 = vmatpush1.msra.mxu0 0.0
    %492 = vmatprep.subr.mxu0 0.0
    %493 = vmatpush1.msra.mxu0 0.0
    %494 = vmatprep.subr.mxu0 0.0
    %495 = vmatpush1.msra.mxu0 0.0
    %496 = vmatprep.subr.mxu0 0.0
    %497 = vmatpush1.msra.mxu0 0.0
    %498 = vmatprep.subr.mxu0 0.0
    %499 = vmatpush1.msra.mxu0 0.0
    %500 = vmatprep.subr.mxu0 0.0
    %501 = vmatpush1.msra.mxu0 0.0
    %502 = vmatprep.subr.mxu0 0.0
    %503 = vmatpush1.msra.mxu0 0.0
    %504 = vmatprep.subr.mxu0 0.0
    %505 = vmatpush1.msra.mxu0 0.0
    %506 = vmatprep.subr.mxu0 0.0
    %507 = vmatpush1.msra.mxu0 0.0
    %508 = vmatprep.subr.mxu0 0.0
    %509 = vmatpush1.msra.mxu0 0.0
    %510 = vmatprep.subr.mxu0 0.0
    %511 = vmatpush1.msra.mxu0 0.0
    %512 = vmatprep.subr.mxu0 0.0
    %513 = vmatpush1.msra.mxu0 0.0
    %514 = vmatprep.subr.mxu0 0.0
    %515 = vmatpush1.msra.mxu0 0.0
    %516 = vmatprep.subr.mxu0 0.0
    %517 = vmatpush1.msra.mxu0 0.0
    %518 = vmatprep.subr.mxu0 0.0
    %519 = vmatpush1.msra.mxu0 0.0
    %520 = vmatprep.mubr.f32.mxu0 0.0
    %521 = vmatmul.mubr.f32.gmra.mrb[0].mxu0 %v451
    %v522 = vpop.f32.mrb[0].mxu0
    %v523 = vadd.f32 %v448, %v522
    %v524 = vpop.f32.mrb[0].mxu0
    %525 = vmatprep.mubr.f32.mxu0 0.0
    %526 = vmatmul.mubr.f32.gmra.mrb[0].mxu0 %v454
    %v527 = vpop.f32.mrb[0].mxu0
    %v528 = vadd.f32 %v448, %v527
    %v529 = vpop.f32.mrb[0].mxu0
    %530 = vdwg.mxu0
    %v531 = vmax.f32 %v523, 0.0
    %v532 = vmax.f32 %v528, 0.0
    %v535 = vunpack.c.l.s4 1966171168
    %v536 = vunpack.c.0.s8 %v535
    %v537 = vlaneseq
    %v538 = vshrl.u32 %v537, 7
    %v539 = vsub.s32 %v536, %v538
    %v540 = vrot.slane %v360, %v539
    %v541 = vcombine.high %v540, %v540
    %v543 = vunpack.c.l.s4 1966171168
    %v544 = vunpack.c.0.s8 %v543
    %v545 = vlaneseq
    %v546 = vshrl.u32 %v545, 7
    %v547 = vsub.s32 %v544, %v546
    %v548 = vrot.slane %v540, %v547
    %v550 = vunpack.c.l.s4 1966171168
    %v551 = vunpack.c.0.s8 %v550
    %v552 = vlaneseq
    %v553 = vshrl.u32 %v552, 7
    %v554 = vsub.s32 %v551, %v553
    %v555 = vrot.slane %v541, %v554
    %v556 = vlaneseq
    %v557 = vshrl.u32 %v556, 7
    %v558 = vsub.s32 0, %v557
    %v559 = vrot.slane %v548, %v558
    %v560 = vlaneseq
    %v561 = vshrl.u32 %v560, 7
    %v562 = vsub.s32 0, %v561
    %v563 = vrot.slane %v555, %v562
    %v566 = vmul.f32 %v531, %v559
    %v567 = vmul.f32 %v532, %v563
    %v568 = vsel %vm127, %v566, 0.0
    %569 = vadd.xlane.f32.xlu0 %v568
    %v570 = vpop.xlane.xlu0 %569
    %v571 = vsel %vm127, %v567, 0.0
    %572 = vadd.xlane.f32.xlu0 %v571
    %v573 = vpop.xlane.xlu0 %572
    %575 = vset.pattern.permute.xlu0 0
    %576 = vperm.xlu0 %575, %v434
    %v577 = vpop.permute.xlu0 %576
    %v578 = vlaneseq
    %v579 = vshrl.u32 %v578, 7
    %v580 = vsub.s32 0, %v579
    %v581 = vrot.slane %v577, %v580
    %v582 = vlaneseq
    %v583 = vshrl.u32 %v582, 7
    %v584 = vsub.s32 1, %v583
    %v585 = vrot.slane %v577, %v584
    %v588 = vadd.f32 %v570, %v581
    %v589 = vadd.f32 %v573, %v585
    %v590 = vld [vmem:[#allocation5] sm:$0x3]
    %vm591 = vcmp.ne.s32.totalorder %v590, 0
    %594 = vset.pattern.permute.xlu0 0
    %595 = vperm.xlu0 %594, %v588
    %v596 = vpop.permute.xlu0 %595
    %597 = vset.pattern.permute.xlu0 0
    %598 = vperm.xlu0 %597, %v589
    %v599 = vpop.permute.xlu0 %598
    %v600 = vlaneseq
    %v601 = vand.u32 %v600, 127
    %v602 = vlaneseq
    %v603 = vshrl.u32 %v602, 7
    %v604 = vsub.s32 %v601, %v603
    %v605 = vrot.slane %v596, %v604
    %v606 = vlaneseq
    %v607 = vshrl.u32 %v606, 7
    %v608 = vsub.s32 %v601, %v607
    %v609 = vrot.slane %v599, %v608
    %vm610 = vcmask 1041409
    %v611 = vsel %vm610, %v609, %v605
    %v613 = vsel %vm591, %v611, -3.4028235e+38
    %vm614 = vcmask 58368
    %615 = vst.msk [vmem:[#allocation13] sm:$0x3] %vm614, %v613
    // Predicated region
    $region70: #{tpu_custom_call.1} parent=1 // pred_check
      _
    $region71: #{tpu_custom_call.1} parent=1 // pred_check_branch
      %617 = sbr.rel (0) target = $region73
    $region72: #{tpu_custom_call.1} parent=1 // pred_region
      %s619 = ssub.s32 32, 32
      %620 = vsyncadd [#allocation4], %s619
      %s622 = sshll.u32 [#allocation13], 4
      %s623 = int_to_ptr.vmem [resolvable:$true] %s622
      %625 = dma.vmem_to_hbm [thread:$0]  %s623, 32, %s11, [#allocation4]
    $region73: #{tpu_custom_call.1} parent=1 // pred_fallthru
      _
    // Predicated region
    $region74: #{tpu_custom_call.1} parent=1 // pred_check
      _
    $region75: #{tpu_custom_call.1} parent=1 // pred_check_branch
      %627 = sbr.rel (0) target = $region77
    $region76: #{tpu_custom_call.1} parent=1 // pred_region
      %628 = dma.done [#allocation4], 32
    $region77: #{tpu_custom_call.1} parent=1 // pred_fallthru
      _
    %629 = vsyncpa [#allocation3], 1
    %630 = vsyncpa [#allocation6], 1
    %631 = vsyncpa [#allocation9], 1
    %632 = vsyncpa [#allocation12], 1
    %633 = vsyncpa [#allocation4], 1

</llo_original>
